<compile_context>
chip_gen: v6e
topology: v6e:2x2x1
jax: 0.10.0
libtpu: 0.0.40
codegen_flags: <defaults>
</compile_context>

<pallas_src>
import math
from functools import partial

import jax
import jax.numpy as jnp
import numpy as np
from jax.experimental import pallas as pl
from jax.experimental.pallas import tpu as pltpu

# ---- module-level physics constants (globals in the PyTorch script) ----
N_COORD = 3                     # number of coordinates (e.g. 3 quarks)
NC = 3                          # number of colors
ALPHA = 0.1                     # coupling
SPOILA = 1.0
SPOILF = "hwf"                  # hydrogen-like trial wavefunction
CF = (NC ** 2 - 1) / (2 * NC)
VB = ALPHA * CF
A0 = SPOILA * 2.0 / VB          # a0 = spoila * 2 / VB

LANE = 128                      # walkers per lane row
ROWS_PER_BLOCK = 512            # sublane rows per grid step -> 65536 walkers/step

_PAIRS = [(a, b) for a in range(N_COORD) for b in range(a + 1, N_COORD)]


def _wvfn_kernel(params_ref, coords_ref, o1_ref, o2_ref, *, vb):
    # params_ref : SMEM (2,) f32 = [a0, |C0|^2]
    # coords_ref : VMEM (9, R, 128) f32; component c of particle a at [3*a + c]
    # o1/o2      : VMEM (R, 128) f32 (lane- and sublane-dense output slabs)
    a0 = params_ref[0]
    c0sq = params_ref[1]
    inv_a0 = 1.0 / a0

    # Fold every scalar constant on the scalar side so the per-walker epilogue
    # is a handful of VPU ops:
    #   conj(psi) H psi / VB^2 = |C0|^2 P^2 (-1/2 lap_sum + V) / VB^2
    #                          = P^2 * ( kg*grad_sq_u + ki*inv_r_sum )
    # where grad_sq_u is the unit-vector form of a0^2 * sum_a |grad_a S|^2 and
    #   kg = |C0|^2/VB^2 * (-1/2)/a0^2,   ki = |C0|^2/VB^2 * (2/a0 - VB).
    scale = c0sq * (1.0 / (vb * vb))
    kg = scale * (-0.5) * inv_a0 * inv_a0
    ki = scale * (2.0 * inv_a0 - vb)

    xs = [coords_ref[3 * a + 0] for a in range(N_COORD)]
    ys = [coords_ref[3 * a + 1] for a in range(N_COORD)]
    zs = [coords_ref[3 * a + 2] for a in range(N_COORD)]

    diffs, inv_rs = {}, {}
    inv_r_sum = 0.0             # sum_{a<b} 1/r_ab
    sum_r = 0.0                 # sum_{a<b} r_ab
    for (a, b) in _PAIRS:
        dx = xs[a] - xs[b]
        dy = ys[a] - ys[b]
        dz = zs[a] - zs[b]
        d2 = dx * dx + dy * dy + dz * dz
        inv_r = jax.lax.rsqrt(d2)          # single EUP op per pair
        diffs[(a, b)] = (dx, dy, dz)
        inv_rs[(a, b)] = inv_r
        inv_r_sum = inv_r_sum + inv_r
        sum_r = sum_r + d2 * inv_r         # r_ab == sqrt(d2), no extra sqrt/div

    if N_COORD == 3:
        # Algebraic identity for 3 particles (kills all per-particle gradient
        # accumulators and the big grad_sq reduction):
        #   sum_a |g_a|^2 = N(N-1) + 2*(u01.u02 - u01.u12 + u02.u12)
        # with u_ab = (x_a - x_b)/r_ab and g_a = sum_{b!=a} u_ab.
        d01, d02, d12 = diffs[(0, 1)], diffs[(0, 2)], diffs[(1, 2)]
        i01, i02, i12 = inv_rs[(0, 1)], inv_rs[(0, 2)], inv_rs[(1, 2)]
        dot_01_02 = d01[0] * d02[0] + d01[1] * d02[1] + d01[2] * d02[2]
        dot_01_12 = d01[0] * d12[0] + d01[1] * d12[1] + d01[2] * d12[2]
        dot_02_12 = d02[0] * d12[0] + d02[1] * d12[1] + d02[2] * d12[2]
        grad_sq_u = 6.0 + 2.0 * (dot_01_02 * (i01 * i02)
                                 - dot_01_12 * (i01 * i12)
                                 + dot_02_12 * (i02 * i12))
    else:
        # General fallback: accumulate unit vectors per particle.
        zero = jnp.zeros_like(xs[0])
        gx = [zero] * N_COORD
        gy = [zero] * N_COORD
        gz = [zero] * N_COORD
        for (a, b) in _PAIRS:
            dx, dy, dz = diffs[(a, b)]
            inv_r = inv_rs[(a, b)]
            ux, uy, uz = dx * inv_r, dy * inv_r, dz * inv_r
            gx[a] = gx[a] + ux; gy[a] = gy[a] + uy; gz[a] = gz[a] + uz
            gx[b] = gx[b] - ux; gy[b] = gy[b] - uy; gz[b] = gz[b] - uz
        grad_sq_u = 0.0
        for a in range(N_COORD):
            grad_sq_u = grad_sq_u + (gx[a] * gx[a] + gy[a] * gy[a] + gz[a] * gz[a])

    P = jnp.exp(-sum_r * inv_a0)              # psi / C0  (single exp per walker)
    P2 = P * P

    o1_ref[...] = P2 * (kg * grad_sq_u + ki * inv_r_sum)   # conj(psi) H psi / VB^2
    o2_ref[...] = c0sq * P2                                 # |conj(psi)|^2


@jax.jit
def wvfn_forward(Rs, A, C):
    """Forward pass of the `wvfn` module.  Rs: (N_walkers, N_COORD, 3)."""
    Nw = Rs.shape[0]
    assert Rs.shape == (Nw, N_COORD, 3)
    Rs_f = Rs.astype(jnp.float32)

    # ---- block geometry ---------------------------------------------------
    nb0 = -(-Nw // LANE)                      # sublane rows needed (ceil)
    if nb0 <= 8:
        rows = nb0                            # single tiny block (full-dim block)
    else:
        # >= 2 grid steps so v7x's two TensorCores both get work; rows is a
        # multiple of 8 (sublane tiling), capped at ROWS_PER_BLOCK.
        half = -(-nb0 // 2)
        rows = min(ROWS_PER_BLOCK, ((half + 7) // 8) * 8)
    nb = -(-nb0 // rows) * rows               # pad row count to whole blocks
    Nw_pad = nb * LANE

    # ---- layout: one transpose copy, lane-axis pad fused into it ----------
    # (Nw, N, 3) -> (9, Nw) walker-major (lane-dense).  Padded walkers are
    # discarded after the kernel, so zero-padding (which produces NaN in those
    # lanes via rsqrt(0)) is harmless and the cheapest fill.
    # (Best case: produce walkers upstream already in (9, Nw) layout and skip
    #  this copy entirely.)
    coords = jnp.transpose(Rs_f, (1, 2, 0)).reshape(N_COORD * 3, Nw)
    if Nw_pad != Nw:
        coords = jnp.pad(coords, ((0, 0), (0, Nw_pad - Nw)))
    coords = coords.reshape(N_COORD * 3, nb, LANE)

    # SMEM scalar params (no host sync, no recompile when A / C change)
    a0 = A[0].astype(jnp.float32)
    c0sq = jnp.real(C[0] * jnp.conj(C[0])).astype(jnp.float32)
    params = jnp.stack([a0, c0sq])            # (2,) f32

    kernel = partial(_wvfn_kernel, vb=float(VB))

    coords_spec = pl.BlockSpec((N_COORD * 3, rows, LANE), lambda i: (0, i, 0))
    out_spec = pl.BlockSpec((rows, LANE), lambda i: (i, 0))

    o1, o2 = pl.pallas_call(
        kernel,
        out_shape=(jax.ShapeDtypeStruct((nb, LANE), jnp.float32),
                   jax.ShapeDtypeStruct((nb, LANE), jnp.float32)),
        grid_spec=pltpu.PrefetchScalarGridSpec(
            num_scalar_prefetch=0,
            grid=(nb // rows,),
            in_specs=[pl.BlockSpec(memory_space=pltpu.MemorySpace.SMEM),
                      coords_spec],
            out_specs=[out_spec, out_spec]),
        compiler_params=pltpu.CompilerParams(
            dimension_semantics=("parallel",),
            # allow XLA to fuse the transpose/pad producer into the coords
            # operand instead of materializing it in HBM.
            allow_input_fusion=[False, True]),
        # perf note: if per-step DMA setup shows as exposed gaps on v7x,
        # add pipeline_mode=pl.Buffered(3) to coords_spec (VMEM headroom exists).
    )(params, coords)

    # glue: drop padded walkers; cast out1 to complex64 to match the torch
    # module's return dtype (slice+reshape+convert fuse into one pass; drop the
    # cast at the consumer if only the real part is used and HBM traffic matters).
    out1 = o1.reshape(-1)[:Nw].astype(jnp.complex64)   # psistar * H psi / VB^2
    out2 = o2.reshape(-1)[:Nw]                         # |psistar|^2
    return out1, out2


def _reference(Rs, A, C):
    """Pure-JAX reference of the same closed-form expressions."""
    Rs = Rs.astype(jnp.float32)
    a0 = A[0].astype(jnp.float32)
    diff = Rs[:, :, None, :] - Rs[:, None, :, :]              # (Nw, N, N, 3)
    d = jnp.sqrt(jnp.sum(diff ** 2, -1) + jnp.eye(N_COORD)[None])
    iu = jnp.triu_indices(N_COORD, 1)
    r_pairs = d[:, iu[0], iu[1]]                              # (Nw, npairs)
    sum_r = r_pairs.sum(-1)
    V = (-VB / r_pairs).sum(-1)
    P = jnp.exp(-sum_r / a0)
    mask = 1.0 - jnp.eye(N_COORD)
    unit = diff / d[..., None]
    g = jnp.sum(unit * mask[None, :, :, None], axis=2)        # (Nw, N, 3)
    grad_sq = jnp.sum(g ** 2, -1) / a0 ** 2
    inv_r_sum = jnp.sum(mask[None] / d, axis=2)
    lap_s = 2.0 / a0 * inv_r_sum
    lap_sum = jnp.sum(grad_sq - lap_s, axis=1)
    c0sq = jnp.real(C[0] * jnp.conj(C[0])).astype(jnp.float32)
    out1 = c0sq * P * P * (-0.5 * lap_sum + V) / jnp.float32(VB ** 2)
    out2 = c0sq * P * P
    return out1.astype(jnp.complex64), out2.astype(jnp.float32)


if __name__ == "__main__":
    key = jax.random.PRNGKey(0)

    # deterministic parameter init, matching wvfn.__init__:
    #   A = a0 * ones(N_coord);  C = ones(N_coord, complex64)
    A = jnp.full((N_COORD,), A0, dtype=jnp.float32)
    C = jnp.ones((N_COORD,), dtype=jnp.complex64)

    ok = True
    # small, non-multiple of 128 -> exercises padding + single-block path
    # larger -> exercises the multi-step (>= 2 grid blocks / megacore) path
    for n_walkers, k in ((200, 0), (2000, 1)):
        Rs = jax.random.normal(jax.random.fold_in(key, k),
                               (n_walkers, N_COORD, 3), dtype=jnp.float32)
        out1, out2 = wvfn_forward(Rs, A, C)
        jax.block_until_ready((out1, out2))
        ref1, ref2 = _reference(Rs, A, C)
        ok &= np.allclose(np.asarray(out1), np.asarray(ref1), rtol=2e-4, atol=1e-4)
        ok &= np.allclose(np.asarray(out2), np.asarray(ref2), rtol=2e-4, atol=1e-5)
    assert ok

    # TODO(synk): 'gauss' spoilf branch (Gaussian trial wavefunction) not wired in;
    # only the 'hwf' branch of Chi_no_v is implemented.
    print("KERNEL_OK")
</pallas_src>

<mosaic_0001>
module attributes {stable_mosaic.version = 11 : i64} {
  func.func @_wvfn_kernel(%arg0: i32, %arg1: memref<2xf32, #tpu.memory_space<smem>>, %arg2: memref<9x2x128xf32, #tpu.memory_space<vmem>>, %arg3: memref<2x128xf32, #tpu.memory_space<vmem>>, %arg4: memref<2x128xf32, #tpu.memory_space<vmem>>) attributes {dimension_semantics = [#tpu.dimension_semantics<parallel>], iteration_bounds = array<i64: 1>, scalar_prefetch = 0 : i64, scratch_operands = 0 : i64, tpu.core_type = #tpu.core_type<tc>, window_params = [{transform_indices = @transform_0, window_bounds = array<i64: 2>}, {transform_indices = @transform_1, window_bounds = array<i64: 9, 2, 128>}, {transform_indices = @transform_2, window_bounds = array<i64: 2, 128>}, {transform_indices = @transform_3, window_bounds = array<i64: 2, 128>}]} {
    %c0 = arith.constant 0 : index
    %0 = memref.load %arg1[%c0] : memref<2xf32, #tpu.memory_space<smem>>
    %c1 = arith.constant 1 : index
    %1 = memref.load %arg1[%c1] : memref<2xf32, #tpu.memory_space<smem>>
    %cst = arith.constant 1.000000e+00 : f32
    %2 = arith.divf %cst, %0 : f32
    %cst_0 = arith.constant 5.625000e+01 : f32
    %3 = arith.mulf %1, %cst_0 : f32
    %cst_1 = arith.constant -5.000000e-01 : f32
    %4 = arith.mulf %3, %cst_1 : f32
    %5 = arith.mulf %4, %2 : f32
    %6 = arith.mulf %5, %2 : f32
    %cst_2 = arith.constant 2.000000e+00 : f32
    %7 = arith.mulf %cst_2, %2 : f32
    %cst_3 = arith.constant 0.13333334 : f32
    %8 = arith.subf %7, %cst_3 : f32
    %9 = arith.mulf %3, %8 : f32
    %c0_4 = arith.constant 0 : index
    %c0_5 = arith.constant 0 : index
    %c0_6 = arith.constant 0 : index
    %10 = vector.load %arg2[%c0_4, %c0_5, %c0_6] : memref<9x2x128xf32, #tpu.memory_space<vmem>>, vector<1x2x128xf32>
    %11 = vector.shape_cast %10 : vector<1x2x128xf32> to vector<2x128xf32>
    %c3 = arith.constant 3 : index
    %c0_7 = arith.constant 0 : index
    %c0_8 = arith.constant 0 : index
    %12 = vector.load %arg2[%c3, %c0_7, %c0_8] : memref<9x2x128xf32, #tpu.memory_space<vmem>>, vector<1x2x128xf32>
    %13 = vector.shape_cast %12 : vector<1x2x128xf32> to vector<2x128xf32>
    %c6 = arith.constant 6 : index
    %c0_9 = arith.constant 0 : index
    %c0_10 = arith.constant 0 : index
    %14 = vector.load %arg2[%c6, %c0_9, %c0_10] : memref<9x2x128xf32, #tpu.memory_space<vmem>>, vector<1x2x128xf32>
    %15 = vector.shape_cast %14 : vector<1x2x128xf32> to vector<2x128xf32>
    %c1_11 = arith.constant 1 : index
    %c0_12 = arith.constant 0 : index
    %c0_13 = arith.constant 0 : index
    %16 = vector.load %arg2[%c1_11, %c0_12, %c0_13] : memref<9x2x128xf32, #tpu.memory_space<vmem>>, vector<1x2x128xf32>
    %17 = vector.shape_cast %16 : vector<1x2x128xf32> to vector<2x128xf32>
    %c4 = arith.constant 4 : index
    %c0_14 = arith.constant 0 : index
    %c0_15 = arith.constant 0 : index
    %18 = vector.load %arg2[%c4, %c0_14, %c0_15] : memref<9x2x128xf32, #tpu.memory_space<vmem>>, vector<1x2x128xf32>
    %19 = vector.shape_cast %18 : vector<1x2x128xf32> to vector<2x128xf32>
    %c7 = arith.constant 7 : index
    %c0_16 = arith.constant 0 : index
    %c0_17 = arith.constant 0 : index
    %20 = vector.load %arg2[%c7, %c0_16, %c0_17] : memref<9x2x128xf32, #tpu.memory_space<vmem>>, vector<1x2x128xf32>
    %21 = vector.shape_cast %20 : vector<1x2x128xf32> to vector<2x128xf32>
    %c2 = arith.constant 2 : index
    %c0_18 = arith.constant 0 : index
    %c0_19 = arith.constant 0 : index
    %22 = vector.load %arg2[%c2, %c0_18, %c0_19] : memref<9x2x128xf32, #tpu.memory_space<vmem>>, vector<1x2x128xf32>
    %23 = vector.shape_cast %22 : vector<1x2x128xf32> to vector<2x128xf32>
    %c5 = arith.constant 5 : index
    %c0_20 = arith.constant 0 : index
    %c0_21 = arith.constant 0 : index
    %24 = vector.load %arg2[%c5, %c0_20, %c0_21] : memref<9x2x128xf32, #tpu.memory_space<vmem>>, vector<1x2x128xf32>
    %25 = vector.shape_cast %24 : vector<1x2x128xf32> to vector<2x128xf32>
    %c8 = arith.constant 8 : index
    %c0_22 = arith.constant 0 : index
    %c0_23 = arith.constant 0 : index
    %26 = vector.load %arg2[%c8, %c0_22, %c0_23] : memref<9x2x128xf32, #tpu.memory_space<vmem>>, vector<1x2x128xf32>
    %27 = vector.shape_cast %26 : vector<1x2x128xf32> to vector<2x128xf32>
    %28 = arith.subf %11, %13 : vector<2x128xf32>
    %29 = arith.subf %17, %19 : vector<2x128xf32>
    %30 = arith.subf %23, %25 : vector<2x128xf32>
    %31 = arith.mulf %28, %28 : vector<2x128xf32>
    %32 = arith.mulf %29, %29 : vector<2x128xf32>
    %33 = arith.addf %31, %32 : vector<2x128xf32>
    %34 = arith.mulf %30, %30 : vector<2x128xf32>
    %35 = arith.addf %33, %34 : vector<2x128xf32>
    %36 = math.rsqrt %35 : vector<2x128xf32>
    %cst_24 = arith.constant 0.000000e+00 : f32
    %37 = vector.broadcast %cst_24 : f32 to vector<2x128xf32>
    %38 = arith.addf %37, %36 : vector<2x128xf32>
    %39 = arith.mulf %35, %36 : vector<2x128xf32>
    %cst_25 = arith.constant 0.000000e+00 : f32
    %40 = vector.broadcast %cst_25 : f32 to vector<2x128xf32>
    %41 = arith.addf %40, %39 : vector<2x128xf32>
    %42 = arith.subf %11, %15 : vector<2x128xf32>
    %43 = arith.subf %17, %21 : vector<2x128xf32>
    %44 = arith.subf %23, %27 : vector<2x128xf32>
    %45 = arith.mulf %42, %42 : vector<2x128xf32>
    %46 = arith.mulf %43, %43 : vector<2x128xf32>
    %47 = arith.addf %45, %46 : vector<2x128xf32>
    %48 = arith.mulf %44, %44 : vector<2x128xf32>
    %49 = arith.addf %47, %48 : vector<2x128xf32>
    %50 = math.rsqrt %49 : vector<2x128xf32>
    %51 = arith.addf %38, %50 : vector<2x128xf32>
    %52 = arith.mulf %49, %50 : vector<2x128xf32>
    %53 = arith.addf %41, %52 : vector<2x128xf32>
    %54 = arith.subf %13, %15 : vector<2x128xf32>
    %55 = arith.subf %19, %21 : vector<2x128xf32>
    %56 = arith.subf %25, %27 : vector<2x128xf32>
    %57 = arith.mulf %54, %54 : vector<2x128xf32>
    %58 = arith.mulf %55, %55 : vector<2x128xf32>
    %59 = arith.addf %57, %58 : vector<2x128xf32>
    %60 = arith.mulf %56, %56 : vector<2x128xf32>
    %61 = arith.addf %59, %60 : vector<2x128xf32>
    %62 = math.rsqrt %61 : vector<2x128xf32>
    %63 = arith.addf %51, %62 : vector<2x128xf32>
    %64 = arith.mulf %61, %62 : vector<2x128xf32>
    %65 = arith.addf %53, %64 : vector<2x128xf32>
    %66 = arith.mulf %28, %42 : vector<2x128xf32>
    %67 = arith.mulf %29, %43 : vector<2x128xf32>
    %68 = arith.addf %66, %67 : vector<2x128xf32>
    %69 = arith.mulf %30, %44 : vector<2x128xf32>
    %70 = arith.addf %68, %69 : vector<2x128xf32>
    %71 = arith.mulf %28, %54 : vector<2x128xf32>
    %72 = arith.mulf %29, %55 : vector<2x128xf32>
    %73 = arith.addf %71, %72 : vector<2x128xf32>
    %74 = arith.mulf %30, %56 : vector<2x128xf32>
    %75 = arith.addf %73, %74 : vector<2x128xf32>
    %76 = arith.mulf %42, %54 : vector<2x128xf32>
    %77 = arith.mulf %43, %55 : vector<2x128xf32>
    %78 = arith.addf %76, %77 : vector<2x128xf32>
    %79 = arith.mulf %44, %56 : vector<2x128xf32>
    %80 = arith.addf %78, %79 : vector<2x128xf32>
    %81 = arith.mulf %36, %50 : vector<2x128xf32>
    %82 = arith.mulf %70, %81 : vector<2x128xf32>
    %83 = arith.mulf %36, %62 : vector<2x128xf32>
    %84 = arith.mulf %75, %83 : vector<2x128xf32>
    %85 = arith.subf %82, %84 : vector<2x128xf32>
    %86 = arith.mulf %50, %62 : vector<2x128xf32>
    %87 = arith.mulf %80, %86 : vector<2x128xf32>
    %88 = arith.addf %85, %87 : vector<2x128xf32>
    %cst_26 = arith.constant 2.000000e+00 : f32
    %89 = vector.broadcast %cst_26 : f32 to vector<2x128xf32>
    %90 = arith.mulf %89, %88 : vector<2x128xf32>
    %cst_27 = arith.constant 6.000000e+00 : f32
    %91 = vector.broadcast %cst_27 : f32 to vector<2x128xf32>
    %92 = arith.addf %91, %90 : vector<2x128xf32>
    %cst_28 = arith.constant 0.000000e+00 : f32
    %93 = vector.broadcast %cst_28 : f32 to vector<2x128xf32>
    %94 = arith.subf %93, %65 : vector<2x128xf32>
    %95 = vector.broadcast %2 : f32 to vector<2x128xf32>
    %96 = arith.mulf %94, %95 : vector<2x128xf32>
    %97 = math.exp %96 : vector<2x128xf32>
    %98 = arith.mulf %97, %97 : vector<2x128xf32>
    %99 = vector.broadcast %6 : f32 to vector<2x128xf32>
    %100 = arith.mulf %99, %92 : vector<2x128xf32>
    %101 = vector.broadcast %9 : f32 to vector<2x128xf32>
    %102 = arith.mulf %101, %63 : vector<2x128xf32>
    %103 = arith.addf %100, %102 : vector<2x128xf32>
    %104 = arith.mulf %98, %103 : vector<2x128xf32>
    %c0_29 = arith.constant 0 : index
    %c0_30 = arith.constant 0 : index
    %105 = vector.load %arg3[%c0_29, %c0_30] : memref<2x128xf32, #tpu.memory_space<vmem>>, vector<2x128xf32>
    tpu.vector_store %arg3[%c0_29, %c0_30], %104 {strides = array<i32>} : memref<2x128xf32, #tpu.memory_space<vmem>>, vector<2x128xf32>,
    %106 = vector.broadcast %1 : f32 to vector<2x128xf32>
    %107 = arith.mulf %106, %98 : vector<2x128xf32>
    %c0_31 = arith.constant 0 : index
    %c0_32 = arith.constant 0 : index
    %108 = vector.load %arg4[%c0_31, %c0_32] : memref<2x128xf32, #tpu.memory_space<vmem>>, vector<2x128xf32>
    tpu.vector_store %arg4[%c0_31, %c0_32], %107 {strides = array<i32>} : memref<2x128xf32, #tpu.memory_space<vmem>>, vector<2x128xf32>,
    return
  }
  func.func @transform_0(%arg0: i32) -> i32 {
    %c0_i32 = arith.constant 0 : i32
    %c0_i32_0 = arith.constant 0 : i32
    return %c0_i32 : i32
  }
  func.func @transform_1(%arg0: i32) -> (i32, i32, i32) {
    %c0_i32 = arith.constant 0 : i32
    %c0_i32_0 = arith.constant 0 : i32
    %c0_i32_1 = arith.constant 0 : i32
    return %c0_i32, %arg0, %c0_i32_0 : i32, i32, i32
  }
  func.func @transform_2(%arg0: i32) -> (i32, i32) {
    %c0_i32 = arith.constant 0 : i32
    %c0_i32_0 = arith.constant 0 : i32
    return %arg0, %c0_i32 : i32, i32
  }
  func.func @transform_3(%arg0: i32) -> (i32, i32) {
    %c0_i32 = arith.constant 0 : i32
    %c0_i32_0 = arith.constant 0 : i32
    return %arg0, %c0_i32 : i32, i32
  }
}

</mosaic_0001>

<llo_original>
// kernel: custom-call
$region0: #{custom-call}
  %s0 = inlined_call_operand.hbm [shape: c64[3], index: 0, kind: input, shape index: {}]
  %s1 = inlined_call_operand.vmem [shape: f32[3], index: 1, kind: output, shape index: {}]
  $region1: #{custom-call} parent=0
    #allocation0 [shape = 's32[1]{0}', space=sflag, size = 0x4, scoped, tag = 'scoped memory for custom-call']
    %2 = vsyncpa [#allocation0], 0
    %s3 = sshll.u32 %s1, 4
    %s4 = int_to_ptr.vmem [resolvable:$true] %s3
    %6 = dma.hbm_to_vmem [thread:$0]  %s0, 16, %s4, [#allocation0]
    %7 = dma.done [#allocation0], 16
    %8 = vsyncpa [#allocation0], 1

// kernel: custom-call.1
$region0: #{custom-call.1}
  %s0 = inlined_call_operand.hbm [shape: c64[3], index: 0, kind: input, shape index: {}]
  %s1 = inlined_call_operand.vmem [shape: f32[3], index: 1, kind: output, shape index: {}]
  %s2 = scalar_lea.hbm %s0, 16
  $region1: #{custom-call.1} parent=0
    #allocation0 [shape = 's32[1]{0}', space=sflag, size = 0x4, scoped, tag = 'scoped memory for custom-call.1']
    %3 = vsyncpa [#allocation0], 0
    %s4 = sshll.u32 %s1, 4
    %s5 = int_to_ptr.vmem [resolvable:$true] %s4
    %7 = dma.hbm_to_vmem [thread:$0]  %s2, 16, %s5, [#allocation0]
    %8 = dma.done [#allocation0], 16
    %9 = vsyncpa [#allocation0], 1

// kernel: custom-call.2
$region0: #{custom-call.2}
  %s0 = inlined_call_operand.vmem [shape: f32[200], index: 0, kind: input, shape index: {}]
  %s1 = inlined_call_operand.vmem [shape: f32[200], index: 1, kind: input, shape index: {}]
  %s2 = inlined_call_operand.hbm [shape: c64[200], index: 2, kind: output, shape index: {}]
  %s3 = scalar_lea.hbm %s2, 32
  $region1: #{custom-call.2} parent=0
    #allocation0 [shape = 's32[1]{0}', space=sflag, size = 0x4, scoped, tag = 'scoped memory for custom-call.2']
    %4 = vsyncpa [#allocation0], 0
    %s5 = sshll.u32 %s0, 4
    %s6 = int_to_ptr.vmem [resolvable:$true] %s5
    %8 = dma.vmem_to_hbm [thread:$0]  %s6, 32, %s2, [#allocation0]
    %9 = dma.done [#allocation0], 32
    %10 = vsyncpa [#allocation0], 1
  $region2: #{custom-call.2} parent=0
    #allocation1 [shape = 's32[1]{0}', space=sflag, size = 0x4, scoped, tag = 'scoped memory for custom-call.2']
    %11 = vsyncpa [#allocation1], 0
    %s12 = sshll.u32 %s1, 4
    %s13 = int_to_ptr.vmem [resolvable:$true] %s12
    %15 = dma.vmem_to_hbm [thread:$0]  %s13, 32, %s3, [#allocation1]
    %16 = dma.done [#allocation1], 32
    %17 = vsyncpa [#allocation1], 1

// kernel: wvfn_forward.1
$region0: #{wvfn_forward.1}
  #allocation0 [shape = 'u32[]', space=smem, size = 0x4, offset = 0x4, fixed_abs, tag = 'smem constant byte address 0x4 - core index']
  #allocation1 [shape = 'u32[144,128]{1,0:T(1,128)}', space=vmem, size = 0x12000, scoped, tag = 'internal scratch']
  %s0 = inlined_call_operand.vmem [shape: f32[2], index: 0, kind: input, shape index: {}]
  %s1 = inlined_call_operand.vmem [shape: f32[9,2,128], index: 1, kind: input, shape index: {}]
  %s2 = inlined_call_operand.vmem [shape: f32[2,128], index: 2, kind: output, shape index: {0}]
  %s3 = inlined_call_operand.hbm [shape: f32[2,128], index: 3, kind: output, shape index: {1}]
  %4 = xla_tuple %s2, %s3
  %s5 = sld [smem:[#allocation0]]
  $region30: #{wvfn_forward.1} parent=0
    _
  %s7 = ssub.s32 1, %s5
  %s8 = scalar_select 0, %s7, %s5
  $region1: #{wvfn_forward.1} parent=0
    #allocation2 [shape = 'u8[512]{0}', space=smem, size = 0x200, scoped, tag = 'input window, operand 0, single buffered']
    #allocation3 [shape = 's32[1]{0}', space=sflag, size = 0x4, scoped, tag = 'scoped memory for wvfn_forward.1']
    #allocation4 [shape = 's32[1]{0}', space=sflag, size = 0x4, scoped, tag = 'scoped memory for wvfn_forward.1']
    #allocation5 [shape = 'u8[1024]{0}', space=vmem, size = 0x400, scoped, tag = 'output window, operand 1, single buffered']
    %9 = vsyncpa [#allocation4], 0
    %10 = vsyncpa [#allocation3], 0
    // Predicated region
    $region2: #{wvfn_forward.1} parent=1 // pred_check
      _
    $region3: #{wvfn_forward.1} parent=1 // pred_check_branch
      %12 = sbr.rel (0) target = $region5
    $region4: #{wvfn_forward.1} parent=1 // pred_region
      %s14 = ssub.s32 16, 16
      %15 = vsyncadd [#allocation4], %s14
      %s17 = sshll.u32 %s0, 4
      %s18 = int_to_ptr.vmem [resolvable:$true] %s17
      %20 = dma.vmem_to_smem %s18, 16, [#allocation2], [#allocation4]
    $region5: #{wvfn_forward.1} parent=1 // pred_fallthru
      _
    // Predicated region
    $region6: #{wvfn_forward.1} parent=1 // pred_check
      _
    $region7: #{wvfn_forward.1} parent=1 // pred_check_branch
      %22 = sbr.rel (0) target = $region9
    $region8: #{wvfn_forward.1} parent=1 // pred_region
      _
    $region9: #{wvfn_forward.1} parent=1 // pred_fallthru
      _
    // Predicated region
    $region10: #{wvfn_forward.1} parent=1 // pred_check
      _
    $region11: #{wvfn_forward.1} parent=1 // pred_check_branch
      %24 = sbr.rel (0) target = $region13
    $region12: #{wvfn_forward.1} parent=1 // pred_region
      %25 = dma.done [#allocation4], 16
    $region13: #{wvfn_forward.1} parent=1 // pred_fallthru
      _
    %26 = sfence
    %s27 = sld [smem:[#allocation2]]
    %s28 = sld [smem:[#allocation2 + $0x1]]
    %v29 = vstv %s27
    %v30 = vrcp.pop %v29
    %s31 = vtos %v30
    %s32 = smul.f32 %s28, 56.25
    %s33 = smul.f32 %s32, -0.5
    %s34 = smul.f32 %s33, %s31
    %s35 = smul.f32 %s34, %s31
    %s36 = smul.f32 %s31, 2.0
    %s37 = ssub.f32 %s36, 0.13333334
    %s38 = smul.f32 %s32, %s37
    %v39 = vld [vmem:[%s1] sm:$0x3]
    %s40 = scalar_lea.vmem %s1, 6
    %v41 = vld [vmem:[%s40] sm:$0x3]
    %s42 = scalar_lea.vmem %s1, 12
    %v43 = vld [vmem:[%s42] sm:$0x3]
    %s44 = scalar_lea.vmem %s1, 2
    %v45 = vld [vmem:[%s44] sm:$0x3]
    %s46 = scalar_lea.vmem %s1, 8
    %v47 = vld [vmem:[%s46] sm:$0x3]
    %s48 = scalar_lea.vmem %s1, 14
    %v49 = vld [vmem:[%s48] sm:$0x3]
    %s50 = scalar_lea.vmem %s1, 4
    %v51 = vld [vmem:[%s50] sm:$0x3]
    %s52 = scalar_lea.vmem %s1, 10
    %v53 = vld [vmem:[%s52] sm:$0x3]
    %s54 = scalar_lea.vmem %s1, 16
    %v55 = vld [vmem:[%s54] sm:$0x3]
    %v56 = vsub.f32 %v39, %v41
    %v57 = vsub.f32 %v45, %v47
    %v58 = vsub.f32 %v51, %v53
    %v59 = vmul.f32 %v56, %v56
    %v60 = vmul.f32 %v57, %v57
    %v61 = vadd.f32 %v59, %v60
    %v62 = vmul.f32 %v58, %v58
    %v63 = vadd.f32 %v61, %v62
    %v64 = vrsqrt.pop %v63
    %v65 = vadd.f32 %v64, 0.0
    %v66 = vmul.f32 %v63, %v64
    %v67 = vadd.f32 %v66, 0.0
    %v68 = vsub.f32 %v39, %v43
    %v69 = vsub.f32 %v45, %v49
    %v70 = vsub.f32 %v51, %v55
    %v71 = vmul.f32 %v68, %v68
    %v72 = vmul.f32 %v69, %v69
    %v73 = vadd.f32 %v71, %v72
    %v74 = vmul.f32 %v70, %v70
    %v75 = vadd.f32 %v73, %v74
    %v76 = vrsqrt.pop %v75
    %v77 = vadd.f32 %v65, %v76
    %v78 = vmul.f32 %v75, %v76
    %v79 = vadd.f32 %v67, %v78
    %v80 = vsub.f32 %v41, %v43
    %v81 = vsub.f32 %v47, %v49
    %v82 = vsub.f32 %v53, %v55
    %v83 = vmul.f32 %v80, %v80
    %v84 = vmul.f32 %v81, %v81
    %v85 = vadd.f32 %v83, %v84
    %v86 = vmul.f32 %v82, %v82
    %v87 = vadd.f32 %v85, %v86
    %v88 = vrsqrt.pop %v87
    %v89 = vadd.f32 %v77, %v88
    %v90 = vmul.f32 %v87, %v88
    %v91 = vadd.f32 %v79, %v90
    %v92 = vmul.f32 %v56, %v68
    %v93 = vmul.f32 %v57, %v69
    %v94 = vadd.f32 %v92, %v93
    %v95 = vmul.f32 %v58, %v70
    %v96 = vadd.f32 %v94, %v95
    %v97 = vmul.f32 %v56, %v80
    %v98 = vmul.f32 %v57, %v81
    %v99 = vadd.f32 %v97, %v98
    %v100 = vmul.f32 %v58, %v82
    %v101 = vadd.f32 %v99, %v100
    %v102 = vmul.f32 %v68, %v80
    %v103 = vmul.f32 %v69, %v81
    %v104 = vadd.f32 %v102, %v103
    %v105 = vmul.f32 %v70, %v82
    %v106 = vadd.f32 %v104, %v105
    %v107 = vmul.f32 %v64, %v76
    %v108 = vmul.f32 %v96, %v107
    %v109 = vmul.f32 %v64, %v88
    %v110 = vmul.f32 %v101, %v109
    %v111 = vsub.f32 %v108, %v110
    %v112 = vmul.f32 %v76, %v88
    %v113 = vmul.f32 %v106, %v112
    %v114 = vadd.f32 %v111, %v113
    %v115 = vmul.f32 %v114, 2.0
    %v116 = vadd.f32 %v115, 6.0
    %v117 = vsub.f32 0.0, %v91
    %v118 = vstv %s31
    %v119 = vmul.f32 %v117, %v118
    %v120 = vmul.f32 %v119, 1.442695
    %v121 = vpow.pop %v120
    %v122 = vmul.f32 %v121, %v121
    %v123 = vstv %s35
    %v124 = vmul.f32 %v123, %v116
    %v125 = vstv %s38
    %v126 = vmul.f32 %v125, %v89
    %v127 = vadd.f32 %v124, %v126
    %v128 = vmul.f32 %v122, %v127
    %129 = vst [vmem:[%s2] sm:$0x3] %v128
    %v130 = vstv %s28
    %v131 = vmul.f32 %v130, %v122
    %132 = vst [vmem:[#allocation5] sm:$0x3] %v131
    // Predicated region
    $region14: #{wvfn_forward.1} parent=1 // pred_check
      _
    $region15: #{wvfn_forward.1} parent=1 // pred_check_branch
      %134 = sbr.rel (0) target = $region17
    $region16: #{wvfn_forward.1} parent=1 // pred_region
      _
    $region17: #{wvfn_forward.1} parent=1 // pred_fallthru
      _
    // Predicated region
    $region18: #{wvfn_forward.1} parent=1 // pred_check
      _
    $region19: #{wvfn_forward.1} parent=1 // pred_check_branch
      %136 = sbr.rel (0) target = $region21
    $region20: #{wvfn_forward.1} parent=1 // pred_region
      %s138 = ssub.s32 32, 32
      %139 = vsyncadd [#allocation3], %s138
      %s141 = sshll.u32 [#allocation5], 4
      %s142 = int_to_ptr.vmem [resolvable:$true] %s141
      %144 = dma.vmem_to_hbm [thread:$0]  %s142, 32, %s3, [#allocation3]
    $region21: #{wvfn_forward.1} parent=1 // pred_fallthru
      _
    // Predicated region
    $region22: #{wvfn_forward.1} parent=1 // pred_check
      _
    $region23: #{wvfn_forward.1} parent=1 // pred_check_branch
      %146 = sbr.rel (0) target = $region25
    $region24: #{wvfn_forward.1} parent=1 // pred_region
      _
    $region25: #{wvfn_forward.1} parent=1 // pred_fallthru
      _
    // Predicated region
    $region26: #{wvfn_forward.1} parent=1 // pred_check
      _
    $region27: #{wvfn_forward.1} parent=1 // pred_check_branch
      %148 = sbr.rel (0) target = $region29
    $region28: #{wvfn_forward.1} parent=1 // pred_region
      %149 = dma.done [#allocation3], 32
    $region29: #{wvfn_forward.1} parent=1 // pred_fallthru
      _
    %150 = vsyncpa [#allocation3], 1
    %151 = vsyncpa [#allocation4], 1

</llo_original>
